<compile_context>
chip_gen: v7x
topology: tpu7x:2x2x1
jax: 0.10.0
libtpu: 0.0.40
codegen_flags: <defaults>
</compile_context>

<pallas_src>
import math

import jax
import jax.numpy as jnp
from jax.experimental import pallas as pl
from jax.experimental.pallas import tpu as pltpu


def _round_up(x, m):
    return ((x + m - 1) // m) * m


# ---------------------------------------------------------------------------
# Pallas kernels: one (TLq, TCo) output tile of a stride-1 valid conv.
# ---------------------------------------------------------------------------
def _make_fold_kernel():
    # Pre-folded (im2col) operand: a single MXU contraction + bias.
    # x_ref: (1, 1, TLq, Kc_pad)  w_ref: (1, Kc_pad, TCo)  b_ref: (1, TCo)
    def kernel(x_ref, w_ref, b_ref, o_ref):
        acc = jnp.dot(x_ref[0, 0], w_ref[0],
                      preferred_element_type=jnp.float32)        # (TLq, TCo) f32
        o_ref[0] = (acc + b_ref[0][None, :]).astype(o_ref.dtype)
    return kernel


def _make_tap_kernel(M, TLq):
    # Deep-Ci path: M chained dots, f32 accumulate (MRB-friendly on v7x).
    # x_ref: (1, 1, TLx, Ci)  w_ref: (1, M, Ci, TCo)  b_ref: (1, TCo)
    def kernel(x_ref, w_ref, b_ref, o_ref):
        xw = x_ref[0, 0]                                          # (TLx, Ci)
        acc = jnp.dot(xw[0:TLq, :], w_ref[0, 0],
                      preferred_element_type=jnp.float32)
        for m in range(1, M):                                     # static unroll
            acc = acc + jnp.dot(xw[m:m + TLq, :], w_ref[0, m],
                                preferred_element_type=jnp.float32)
        o_ref[0] = (acc + b_ref[0][None, :]).astype(o_ref.dtype)
    return kernel


# ---------------------------------------------------------------------------
# Polyphase weight construction (trace-time Python; K and stride are small).
#
# y[n, o, s*q + r] = bias[o] + sum_{m, i} Wp[r, m, i, o] * x_zp[n, i, q + off_min + m]
# where x_zp is the zero-extended (un-upsampled) input.
# ---------------------------------------------------------------------------
def _build_polyphase(weight, K, s, padding, upsampling):
    taps = []  # list of (phase r, original tap k, relative input offset d)
    if upsampling:
        # Conv1d weight (Co, Ci, K); nearest upsample by s then zero-pad K//2.
        Co, Ci, _ = weight.shape
        p = K // 2
        for r in range(s):
            for k in range(K):
                taps.append((r, k, (r + k - p) // s))     # floor division
        get = lambda k: weight[:, :, k].T                 # (Ci, Co)
    else:
        # ConvTranspose1d weight (Ci, Co, K).
        Ci, Co, _ = weight.shape
        for r in range(s):
            for k in range(K):
                num = r + padding - k
                if num % s == 0:
                    taps.append((r, k, num // s))
        get = lambda k: weight[:, :, k]                   # (Ci, Co)

    ds = [d for (_, _, d) in taps]
    off_min = min(min(ds), 0)
    off_max = max(ds)
    M = off_max - off_min + 1

    Wp = jnp.zeros((s, M, Ci, Co), jnp.float32)
    for (r, k, d) in taps:
        Wp = Wp.at[r, d - off_min].add(get(k).astype(jnp.float32))
    return Wp, off_min, M


# ---------------------------------------------------------------------------
# WaveGANDeconvolution forward
# ---------------------------------------------------------------------------
def wavegan_deconvolution(x_ncl, weight, bias, kernel_size, stride, padding,
                          upsampling=False, *, fold=None, tile_l=1024,
                          compute_dtype=jnp.bfloat16, out_dtype=jnp.float32):
    """x_ncl: (N, C_in, L).  Returns (N, C_out, L_out) float32."""
    N, Ci, L = x_ncl.shape
    K, s = int(kernel_size), int(stride)

    if upsampling:
        # UpsamplingConvo1D(in, out, upsample=stride, K, stride=1, padding=0)
        L_out = L * s + 2 * (K // 2) - K + 1
    else:
        # nn.ConvTranspose1d(in, out, K, stride, padding)
        assert padding <= K - 1, "padding > kernel_size - 1 not supported"
        L_out = (L - 1) * s - 2 * padding + K
    assert L_out > 0

    Wp, off_min, M = _build_polyphase(weight, K, s, padding, upsampling)
    pad_left = -off_min
    Co = Wp.shape[-1]

    # ---- tiling parameters --------------------------------------------------
    TCo = 256 if Co >= 256 else 128          # 256-wide MXU on v6e/v7x; 128 for small Co
    Co_pad = _round_up(Co, TCo)
    Ct = Co_pad // TCo

    Lq = -(-L_out // s)                      # per-phase output length
    TLq = min(_round_up(tile_l, 8), _round_up(Lq, 8))
    Qt = -(-Lq // TLq)
    Lq_pad = Qt * TLq

    if fold is None:
        fold = (M > 1) and (Ci <= 128)       # shallow-Ci layers: fold taps into MXU K

    if fold:
        Kc = M * Ci
        Kc_pad = _round_up(Kc, 128)          # lane-dense contraction dim
        Lp = Lq_pad + (M - 1)
    else:
        Mh = _round_up(M - 1, 8) if M > 1 else 0   # sublane-aligned halo
        TLx = TLq + Mh
        Lp = Lq_pad + Mh

    # ---- channels-last, zero-extended input ---------------------------------
    x_nlc = jnp.transpose(x_ncl, (0, 2, 1)).astype(compute_dtype)      # (N, L, Ci)
    avail = Lp - pad_left
    if L > avail:                                   # tail never read by kept outputs
        x_nlc = x_nlc[:, :avail, :]
    x_ext = jnp.pad(x_nlc, ((0, 0),
                            (pad_left, Lp - pad_left - x_nlc.shape[1]),
                            (0, 0)))                # (N, Lp, Ci)

    if fold:
        # pre-folded (im2col) tiles: (N, Qt, TLq, M*Ci) -> pad to lane-dense Kc_pad
        win = ((jnp.arange(Qt) * TLq)[:, None, None]
               + jnp.arange(TLq)[None, :, None]
               + jnp.arange(M)[None, None, :])                          # (Qt, TLq, M)
        x_tiles = x_ext[:, win, :].reshape(N, Qt, TLq, Kc)
        if Kc_pad != Kc:
            x_tiles = jnp.pad(x_tiles, ((0, 0), (0, 0), (0, 0), (0, Kc_pad - Kc)))
        x_block = (1, 1, TLq, Kc_pad)
    else:
        # overlapping halo tiles: (N, Qt, TLx, Ci)
        win = (jnp.arange(Qt) * TLq)[:, None] + jnp.arange(TLx)[None, :]
        x_tiles = x_ext[:, win, :]
        x_block = (1, 1, TLx, Ci)

    # ---- weights / bias (zero-padded to lane-dense Co) ----------------------
    Wp = jnp.pad(Wp, ((0, 0), (0, 0), (0, 0), (0, Co_pad - Co)))
    if fold:
        w_blk = Wp.reshape(s, Kc, Co_pad)
        if Kc_pad != Kc:
            w_blk = jnp.pad(w_blk, ((0, 0), (0, Kc_pad - Kc), (0, 0)))
        w_blk = w_blk.astype(compute_dtype)                  # (s, Kc_pad, Co_pad)
        w_block = (1, Kc_pad, TCo)
    else:
        w_blk = Wp.astype(compute_dtype)                     # (s, M, Ci, Co_pad)
        w_block = (1, M, Ci, TCo)
    b_blk = jnp.pad(bias.astype(jnp.float32), (0, Co_pad - Co)).reshape(1, Co_pad)

    # ---- grid order: keep the larger operand resident across inner axes -----
    x_resident = int(x_tiles.nbytes) >= int(w_blk.nbytes)
    if x_resident:
        grid = (N, Qt, s, Ct)                # x stays resident across (s, Ct)
        x_map = lambda n, q, r, c: (n, q, 0, 0)
        w_map = ((lambda n, q, r, c: (r, 0, c)) if fold
                 else (lambda n, q, r, c: (r, 0, 0, c)))
        b_map = lambda n, q, r, c: (0, c)
        o_map = lambda n, q, r, c: (n, q, r * Ct + c)
    else:
        grid = (N, s, Ct, Qt)                # weights stay resident across q
        x_map = lambda n, r, c, q: (n, q, 0, 0)
        w_map = ((lambda n, r, c, q: (r, 0, c)) if fold
                 else (lambda n, r, c, q: (r, 0, 0, c)))
        b_map = lambda n, r, c, q: (0, c)
        o_map = lambda n, r, c, q: (n, q, r * Ct + c)

    # ---- VMEM budget / cost estimate -----------------------------------------
    itemsize = jnp.dtype(compute_dtype).itemsize
    out_isz = jnp.dtype(out_dtype).itemsize
    xblk = (TLq * Kc_pad if fold else TLx * Ci) * itemsize
    wblk = (Kc_pad if fold else M * Ci) * TCo * itemsize
    oblk = TLq * TCo * out_isz
    bblk = TCo * 4
    vmem_limit = int(min(max(3 * (xblk + wblk + oblk + bblk) + (4 << 20), 16 << 20),
                         32 << 20))

    cost = pl.CostEstimate(
        flops=int(2 * N * s * Lq_pad * M * Ci * Co_pad),
        transcendentals=0,
        bytes_accessed=int(x_tiles.nbytes + w_blk.nbytes + b_blk.nbytes
                           + N * Lq_pad * s * Co_pad * out_isz),
    )

    kernel = _make_fold_kernel() if fold else _make_tap_kernel(M, TLq)

    # ---- pallas call: output written pre-interleaved (N, Lq_pad, s*Co_pad) ----
    y_flat = pl.pallas_call(
        kernel,
        out_shape=jax.ShapeDtypeStruct((N, Lq_pad, s * Co_pad), out_dtype),
        grid_spec=pltpu.PrefetchScalarGridSpec(
            num_scalar_prefetch=0,
            grid=grid,
            in_specs=[
                pl.BlockSpec(x_block, x_map),
                pl.BlockSpec(w_block, w_map),
                pl.BlockSpec((1, TCo), b_map),
            ],
            out_specs=pl.BlockSpec((1, TLq, TCo), o_map),
        ),
        compiler_params=pltpu.CompilerParams(
            dimension_semantics=("parallel",) * 4,
            vmem_limit_bytes=vmem_limit),
        cost_estimate=cost,
    )(x_tiles, w_blk, b_blk)

    # ---- phase de-interleave is now a pure reshape; crop & back to NCL --------
    y = y_flat.reshape(N, Lq_pad * s, Co_pad)[:, :L_out, :Co]
    y = jnp.transpose(y, (0, 2, 1))
    return y.astype(jnp.float32)


# ---------------------------------------------------------------------------
# Deterministic parameter init (mirrors the PyTorch module's parameter shapes)
# ---------------------------------------------------------------------------
def init_params(key, in_channels, out_channels, kernel_size, upsampling=False):
    kw, kb = jax.random.split(key)
    if upsampling:
        # nn.Conv1d weight: (out, in, K)
        bound = 1.0 / math.sqrt(in_channels * kernel_size)
        w = jax.random.uniform(kw, (out_channels, in_channels, kernel_size),
                               jnp.float32, -bound, bound)
    else:
        # nn.ConvTranspose1d weight: (in, out, K)
        bound = 1.0 / math.sqrt(out_channels * kernel_size)
        w = jax.random.uniform(kw, (in_channels, out_channels, kernel_size),
                               jnp.float32, -bound, bound)
    b = jax.random.uniform(kb, (out_channels,), jnp.float32, -bound, bound)
    return w, b


# ---------------------------------------------------------------------------
# Pure-JAX references (for correctness check only)
# ---------------------------------------------------------------------------
def ref_conv_transpose1d(x, w, b, stride, padding):
    N, Ci, L = x.shape
    _, Co, K = w.shape
    L_full = (L - 1) * stride + K
    contrib = jnp.einsum('nil,iok->nolk', x, w)           # (N, Co, L, K)
    y = jnp.zeros((N, Co, L_full), jnp.float32)
    for k in range(K):
        y = y.at[:, :, k:k + (L - 1) * stride + 1:stride].add(contrib[..., k])
    L_out = (L - 1) * stride - 2 * padding + K
    return y[:, :, padding:padding + L_out] + b[None, :, None]


def ref_upsampling_conv(x, w, b, upsample, kernel_size):
    K = kernel_size
    x_up = jnp.repeat(x, upsample, axis=2)
    p = K // 2
    x_pad = jnp.pad(x_up, ((0, 0), (0, 0), (p, p)))
    L_out = x_pad.shape[2] - K + 1
    windows = jnp.stack([x_pad[:, :, k:k + L_out] for k in range(K)], axis=-1)
    return jnp.einsum('nilk,oik->nol', windows, w) + b[None, :, None]


if __name__ == "__main__":
    key = jax.random.PRNGKey(0)
    kx, kp1, kp2, kx2, kp3, kp4, kx3 = jax.random.split(key, 7)

    # ---- small ConvTranspose1d (default branch, folded MXU path) -------------
    N, Ci, Co, L = 2, 4, 6, 8
    K, s, pad = 5, 2, 2
    x = jax.random.normal(kx, (N, Ci, L), jnp.float32)
    w_t, b_t = init_params(kp1, Ci, Co, K, upsampling=False)
    y_t = wavegan_deconvolution(x, w_t, b_t, K, s, pad, upsampling=False)
    jax.block_until_ready(y_t)
    y_t_ref = ref_conv_transpose1d(x, w_t, b_t, s, pad)
    assert y_t.shape == (N, Co, (L - 1) * s - 2 * pad + K)
    assert jnp.allclose(y_t, y_t_ref, atol=5e-2, rtol=5e-2), \
        float(jnp.max(jnp.abs(y_t - y_t_ref)))

    # ---- same branch, per-tap (non-folded) MXU path --------------------------
    y_t2 = wavegan_deconvolution(x, w_t, b_t, K, s, pad, upsampling=False,
                                 fold=False)
    jax.block_until_ready(y_t2)
    assert jnp.allclose(y_t2, y_t_ref, atol=5e-2, rtol=5e-2), \
        float(jnp.max(jnp.abs(y_t2 - y_t_ref)))

    # ---- small upsampling branch: Upsample(nearest) + pad + Conv1d -----------
    w_u, b_u = init_params(kp2, Ci, Co, K, upsampling=True)
    y_u = wavegan_deconvolution(x, w_u, b_u, K, s, pad, upsampling=True)
    jax.block_until_ready(y_u)
    y_u_ref = ref_upsampling_conv(x, w_u, b_u, s, K)
    assert y_u.shape == y_u_ref.shape
    assert jnp.allclose(y_u, y_u_ref, atol=5e-2, rtol=5e-2), \
        float(jnp.max(jnp.abs(y_u - y_u_ref)))

    # ---- multi-tile ConvTranspose1d (Qt>1, Ct>1), exact f32 compute ----------
    N2, Ci2, Co2, L2 = 1, 16, 160, 300
    K2, s2, pad2 = 25, 4, 11
    x2 = jax.random.normal(kx2, (N2, Ci2, L2), jnp.float32)
    w2, b2 = init_params(kp3, Ci2, Co2, K2, upsampling=False)
    y2 = wavegan_deconvolution(x2, w2, b2, K2, s2, pad2, upsampling=False,
                               tile_l=128, compute_dtype=jnp.float32)
    jax.block_until_ready(y2)
    y2_ref = ref_conv_transpose1d(x2, w2, b2, s2, pad2)
    assert y2.shape == y2_ref.shape
    assert jnp.allclose(y2, y2_ref, atol=1e-3, rtol=1e-3), \
        float(jnp.max(jnp.abs(y2 - y2_ref)))

    # ---- same shapes, per-tap bf16 path (exercises halo tiles + Ct>1) --------
    y2b = wavegan_deconvolution(x2, w2, b2, K2, s2, pad2, upsampling=False,
                                tile_l=128, fold=False)
    jax.block_until_ready(y2b)
    assert jnp.allclose(y2b, y2_ref, atol=5e-2, rtol=5e-2), \
        float(jnp.max(jnp.abs(y2b - y2_ref)))

    # ---- multi-tile upsampling branch (Qt>1, Ct>1) ----------------------------
    N3, Ci3, Co3, L3 = 1, 8, 140, 200
    K3, s3 = 25, 4
    x3 = jax.random.normal(kx3, (N3, Ci3, L3), jnp.float32)
    w3, b3 = init_params(kp4, Ci3, Co3, K3, upsampling=True)
    y3 = wavegan_deconvolution(x3, w3, b3, K3, s3, 0, upsampling=True, tile_l=64)
    jax.block_until_ready(y3)
    y3_ref = ref_upsampling_conv(x3, w3, b3, s3, K3)
    assert y3.shape == y3_ref.shape
    assert jnp.allclose(y3, y3_ref, atol=5e-2, rtol=5e-2), \
        float(jnp.max(jnp.abs(y3 - y3_ref)))

    print("KERNEL_OK")
</pallas_src>

<mosaic_0001>
module attributes {stable_mosaic.version = 11 : i64} {
  func.func @kernel(%arg0: i32, %arg1: i32, %arg2: i32, %arg3: i32, %arg4: memref<1x1x8x128xbf16, #tpu.memory_space<vmem>>, %arg5: memref<1x128x128xbf16, #tpu.memory_space<vmem>>, %arg6: memref<1x128xf32, #tpu.memory_space<vmem>>, %arg7: memref<1x8x128xf32, #tpu.memory_space<vmem>>) attributes {dimension_semantics = [#tpu.dimension_semantics<parallel>, #tpu.dimension_semantics<parallel>, #tpu.dimension_semantics<parallel>, #tpu.dimension_semantics<parallel>], iteration_bounds = array<i64: 2, 2, 1, 1>, scalar_prefetch = 0 : i64, scratch_operands = 0 : i64, tpu.core_type = #tpu.core_type<tc>, window_params = [{transform_indices = @transform_0, window_bounds = array<i64: 1, 1, 8, 128>}, {transform_indices = @transform_1, window_bounds = array<i64: 1, 128, 128>}, {transform_indices = @transform_2, window_bounds = array<i64: 1, 128>}, {transform_indices = @transform_3, window_bounds = array<i64: 1, 8, 128>}]} {
    %c0 = arith.constant 0 : index
    %c0_0 = arith.constant 0 : index
    %c0_1 = arith.constant 0 : index
    %c0_2 = arith.constant 0 : index
    %0 = vector.load %arg4[%c0, %c0_0, %c0_1, %c0_2] : memref<1x1x8x128xbf16, #tpu.memory_space<vmem>>, vector<1x1x8x128xbf16>
    %1 = vector.shape_cast %0 : vector<1x1x8x128xbf16> to vector<8x128xbf16>
    %c0_3 = arith.constant 0 : index
    %c0_4 = arith.constant 0 : index
    %c0_5 = arith.constant 0 : index
    %2 = vector.load %arg5[%c0_3, %c0_4, %c0_5] : memref<1x128x128xbf16, #tpu.memory_space<vmem>>, vector<1x128x128xbf16>
    %3 = vector.shape_cast %2 : vector<1x128x128xbf16> to vector<128x128xbf16>
    %cst = arith.constant dense<0.000000e+00> : vector<8x128xf32>
    %4 = tpu.matmul %1, %3, %cst {dimension_numbers = #tpu.dot_dimension_numbers<[1], [0], [0], [1], [0, 0, 1, 1], [], []>} : vector<8x128xbf16>, vector<128x128xbf16>, vector<8x128xf32> -> vector<8x128xf32>
    %c0_6 = arith.constant 0 : index
    %c0_7 = arith.constant 0 : index
    %5 = vector.load %arg6[%c0_6, %c0_7] : memref<1x128xf32, #tpu.memory_space<vmem>>, vector<1x128xf32>
    %6 = vector.shape_cast %5 : vector<1x128xf32> to vector<128xf32>
    %7 = vector.shape_cast %6 : vector<128xf32> to vector<1x128xf32>
    %8 = vector.broadcast %7 : vector<1x128xf32> to vector<8x128xf32>
    %9 = arith.addf %4, %8 : vector<8x128xf32>
    %c0_8 = arith.constant 0 : index
    %c0_9 = arith.constant 0 : index
    %c0_10 = arith.constant 0 : index
    %10 = vector.load %arg7[%c0_8, %c0_9, %c0_10] : memref<1x8x128xf32, #tpu.memory_space<vmem>>, vector<1x8x128xf32>
    %11 = vector.shape_cast %10 : vector<1x8x128xf32> to vector<8x128xf32>
    %12 = vector.shape_cast %9 : vector<8x128xf32> to vector<1x8x128xf32>
    tpu.vector_store %arg7[%c0_8, %c0_9, %c0_10], %12 {strides = array<i32>} : memref<1x8x128xf32, #tpu.memory_space<vmem>>, vector<1x8x128xf32>,
    return
  }
  func.func @transform_0(%arg0: i32, %arg1: i32, %arg2: i32, %arg3: i32) -> (i32, i32, i32, i32) {
    %c0_i32 = arith.constant 0 : i32
    %c0_i32_0 = arith.constant 0 : i32
    %c0_i32_1 = arith.constant 0 : i32
    return %arg0, %arg3, %c0_i32, %c0_i32_0 : i32, i32, i32, i32
  }
  func.func @transform_1(%arg0: i32, %arg1: i32, %arg2: i32, %arg3: i32) -> (i32, i32, i32) {
    %c0_i32 = arith.constant 0 : i32
    %c0_i32_0 = arith.constant 0 : i32
    return %arg1, %c0_i32, %arg2 : i32, i32, i32
  }
  func.func @transform_2(%arg0: i32, %arg1: i32, %arg2: i32, %arg3: i32) -> (i32, i32) {
    %c0_i32 = arith.constant 0 : i32
    %c0_i32_0 = arith.constant 0 : i32
    return %c0_i32, %arg2 : i32, i32
  }
  func.func @transform_3(%arg0: i32, %arg1: i32, %arg2: i32, %arg3: i32) -> (i32, i32, i32) {
    %c1_i32 = arith.constant 1 : i32
    %0 = arith.muli %arg1, %c1_i32 : i32
    %1 = arith.addi %0, %arg2 : i32
    %c0_i32 = arith.constant 0 : i32
    return %arg0, %arg3, %1 : i32, i32, i32
  }
}

</mosaic_0001>

<llo_original>
// kernel: tpu_custom_call.1
$region0: #{tpu_custom_call.1}
  #allocation0 [shape = 'u32[]', space=smem, size = 0x4, offset = 0x4, fixed_abs, tag = 'smem constant byte address 0x4 - core index']
  #allocation1 [shape = 'u32[144,128]{1,0:T(1,128)}', space=vmem, size = 0x12000, scoped, tag = 'internal scratch']
  %s0 = inlined_call_operand.hbm [shape: bf16[2,1,8,128], index: 0, kind: input, shape index: {}]
  %s1 = inlined_call_operand.hbm [shape: bf16[2,128,128], index: 1, kind: input, shape index: {}]
  %s2 = inlined_call_operand.vmem [shape: f32[1,128], index: 2, kind: input, shape index: {}]
  %s3 = inlined_call_operand.hbm [shape: f32[2,8,256], index: 3, kind: output, shape index: {}]
  %s4 = sld [smem:[#allocation0]]
  $region53: #{tpu_custom_call.1} parent=0
    _
  %s6 = ssub.s32 1, %s4
  %s7 = scalar_select 0, %s6, %s4
  $region1: #{tpu_custom_call.1} parent=0
    #allocation2 [shape = 'u8[4096]{0}', space=vmem, size = 0x1000, scoped, tag = 'input window, operand 0']
    #allocation3 [shape = 's32[2]{0}', space=sflag, size = 0x8, scoped, tag = 'scoped memory for tpu_custom_call.1']
    #allocation4 [shape = 's32[2]{0}', space=sflag, size = 0x8, scoped, tag = 'scoped memory for tpu_custom_call.1']
    #allocation5 [shape = 'u8[65536]{0}', space=vmem, size = 0x10000, scoped, tag = 'input window, operand 1']
    #allocation6 [shape = 's32[2]{0}', space=sflag, size = 0x8, scoped, tag = 'scoped memory for tpu_custom_call.1']
    #allocation7 [shape = 'u8[8192]{0}', space=vmem, size = 0x2000, scoped, tag = 'output window, operand 0']
    %8 = vsyncpa [#allocation3], 0
    %s9 = scalar_lea.sflag [#allocation3], 1
    %10 = vsyncpa %s9, 0
    %11 = vsyncpa [#allocation6], 0
    %s12 = scalar_lea.sflag [#allocation6], 1
    %13 = vsyncpa %s12, 0
    %14 = vsyncpa [#allocation4], 0
    %s15 = scalar_lea.sflag [#allocation4], 1
    %16 = vsyncpa %s15, 0
    loop: start=0, step=1, limit=6
    $region2: #{tpu_custom_call.1} parent=1 // loop_pre_header
      _
    $region3: #{tpu_custom_call.1} parent=1 // loop_header
      %s18 = sphi 0, %s22
      %p19 = scmp.ge.s32.totalorder %s18, 6
      %s25 = sphi 0, %s51
      %s26 = sphi 0, %s47
      %s27 = sphi 0, %s43
      %s28 = sphi 0, %s39
      %s29 = sphi 0, %s25
      %s30 = sphi 0, %s26
      %s31 = sphi 0, %s27
      %s32 = sphi 0, %s28
      %s33 = sphi 0, %s29
      %s34 = sphi 0, %s30
      %s35 = sphi 0, %s31
      %s36 = sphi 0, %s32
      %s56 = sphi 0, %s58
      %s59 = sphi 0, %s56
      %s60 = sphi 0, %s59
      %s76 = sphi 0, %s60
      %s84 = sphi 0, %s86
      %s87 = sphi 0, %s84
      %s88 = sphi 0, %s87
      %s104 = sphi 0, %s88
      %s110 = sphi 0, %s112
      %s113 = sphi 0, %s110
      %s114 = sphi 0, %s113
      %s130 = sphi 0, %s114
      %s142 = sphi 0, %s144
      %s145 = sphi 0, %s142
      %s146 = sphi 0, %s145
      %s162 = sphi 0, %s146
    $region4: #{tpu_custom_call.1} parent=1 // loop_header_branch
      %21 = sbr.rel (%p19) target = $region8
    $region5: #{tpu_custom_call.1} parent=1 // loop_body
      %s23 = ssub.s32 %s18, 1
      %s24 = ssub.s32 %s18, 2
      %s37 = sadd.s32 1, %s28
      %p38 = scmp.ge.s32.totalorder %s37, 1
      %s39 = scalar_select %p38, 0, %s37
      %s40 = sadd.s32 1, %s27
      %s41 = scalar_select %p38, %s40, %s27
      %p42 = scmp.ge.s32.totalorder %s41, 1
      %s43 = scalar_select %p42, 0, %s41
      %s44 = sadd.s32 1, %s26
      %s45 = scalar_select %p42, %s44, %s26
      %p46 = scmp.ge.s32.totalorder %s45, 2
      %s47 = scalar_select %p46, 0, %s45
      %s48 = sadd.s32 1, %s25
      %s49 = scalar_select %p46, %s48, %s25
      %p50 = scmp.ge.s32.totalorder %s49, 2
      %s51 = scalar_select %p50, 0, %s49
      %s52 = ssub.s32 %s25, %s51
      %s53 = ssub.s32 %s28, %s39
      %s54 = sor.u32 %s52, %s53
      %p55 = scmp.eq.s32.totalorder %s54, 0
      %s57 = sadd.s32 %s56, 1
      %s58 = scalar_select %p55, %s56, %s57
      %p61 = pneg %p55
      %p62 = scmp.eq.s32.totalorder %s18, 3
      %p63 = por %p61, %p62
      %p64 = scmp.ne.s32.totalorder %s56, %s59
      %p65 = scmp.eq.s32.totalorder %s18, 0
      %p66 = por %p64, %p65
      %p67 = scmp.ne.s32.totalorder %s56, %s59
      %p68 = scmp.eq.s32.totalorder %s23, 3
      %p69 = por %p67, %p68
      %p70 = scmp.ne.s32.totalorder %s59, %s60
      %p71 = scmp.eq.s32.totalorder %s23, 0
      %p72 = por %p70, %p71
      %p73 = scmp.ne.s32.totalorder %s59, %s60
      %p74 = scmp.eq.s32.totalorder %s24, 3
      %p75 = por %p73, %p74
      %p77 = scmp.ne.s32.totalorder %s60, %s76
      %p78 = scmp.eq.s32.totalorder %s24, 0
      %p79 = por %p77, %p78
      %s80 = ssub.s32 %s26, %s47
      %s81 = ssub.s32 %s27, %s43
      %s82 = sor.u32 %s80, %s81
      %p83 = scmp.eq.s32.totalorder %s82, 0
      %s85 = sadd.s32 %s84, 1
      %s86 = scalar_select %p83, %s84, %s85
      %p89 = pneg %p83
      %p90 = scmp.eq.s32.totalorder %s18, 3
      %p91 = por %p89, %p90
      %p92 = scmp.ne.s32.totalorder %s84, %s87
      %p93 = scmp.eq.s32.totalorder %s18, 0
      %p94 = por %p92, %p93
      %p95 = scmp.ne.s32.totalorder %s84, %s87
      %p96 = scmp.eq.s32.totalorder %s23, 3
      %p97 = por %p95, %p96
      %p98 = scmp.ne.s32.totalorder %s87, %s88
      %p99 = scmp.eq.s32.totalorder %s23, 0
      %p100 = por %p98, %p99
      %p101 = scmp.ne.s32.totalorder %s87, %s88
      %p102 = scmp.eq.s32.totalorder %s24, 3
      %p103 = por %p101, %p102
      %p105 = scmp.ne.s32.totalorder %s88, %s104
      %p106 = scmp.eq.s32.totalorder %s24, 0
      %p107 = por %p105, %p106
      %s108 = ssub.s32 %s27, %s43
      %p109 = scmp.eq.s32.totalorder %s108, 0
      %s111 = sadd.s32 %s110, 1
      %s112 = scalar_select %p109, %s110, %s111
      %p115 = pneg %p109
      %p116 = scmp.eq.s32.totalorder %s18, 3
      %p117 = por %p115, %p116
      %p118 = scmp.ne.s32.totalorder %s110, %s113
      %p119 = scmp.eq.s32.totalorder %s18, 0
      %p120 = por %p118, %p119
      %p121 = scmp.ne.s32.totalorder %s110, %s113
      %p122 = scmp.eq.s32.totalorder %s23, 3
      %p123 = por %p121, %p122
      %p124 = scmp.ne.s32.totalorder %s113, %s114
      %p125 = scmp.eq.s32.totalorder %s23, 0
      %p126 = por %p124, %p125
      %p127 = scmp.ne.s32.totalorder %s113, %s114
      %p128 = scmp.eq.s32.totalorder %s24, 3
      %p129 = por %p127, %p128
      %p131 = scmp.ne.s32.totalorder %s114, %s130
      %p132 = scmp.eq.s32.totalorder %s24, 0
      %p133 = por %p131, %p132
      %s134 = sadd.s32 %s26, %s27
      %s135 = sadd.s32 %s47, %s43
      %s136 = ssub.s32 %s25, %s51
      %s137 = ssub.s32 %s28, %s39
      %s138 = sor.u32 %s136, %s137
      %s139 = ssub.s32 %s134, %s135
      %s140 = sor.u32 %s138, %s139
      %p141 = scmp.eq.s32.totalorder %s140, 0
      %s143 = sadd.s32 %s142, 1
      %s144 = scalar_select %p141, %s142, %s143
      %p147 = pneg %p141
      %p148 = scmp.eq.s32.totalorder %s18, 3
      %p149 = por %p147, %p148
      %p150 = scmp.ne.s32.totalorder %s142, %s145
      %p151 = scmp.eq.s32.totalorder %s18, 0
      %p152 = por %p150, %p151
      %p153 = scmp.ne.s32.totalorder %s142, %s145
      %p154 = scmp.eq.s32.totalorder %s23, 3
      %p155 = por %p153, %p154
      %p156 = scmp.ne.s32.totalorder %s145, %s146
      %p157 = scmp.eq.s32.totalorder %s23, 0
      %p158 = por %p156, %p157
      %p159 = scmp.ne.s32.totalorder %s145, %s146
      %p160 = scmp.eq.s32.totalorder %s24, 3
      %p161 = por %p159, %p160
      %p163 = scmp.ne.s32.totalorder %s146, %s162
      %p164 = scmp.eq.s32.totalorder %s24, 0
      %p165 = por %p163, %p164
      %p166 = scmp.le.s32.totalorder 1, %s18
      %p167 = scmp.lt.s32.totalorder %s18, 5
      %p168 = pnand %p166, %p167
      %p169 = pneg %p168
      // Predicated region
      $region9: #{tpu_custom_call.1} parent=5 // pred_check
        _
      $region10: #{tpu_custom_call.1} parent=5 // pred_check_branch
        %171 = sbr.rel (%p168) target = $region12
      $region11: #{tpu_custom_call.1} parent=5 // pred_region
        %s172 = ssub.s32 %s18, 1
        // Predicated region
        $region13: #{tpu_custom_call.1} parent=11 // pred_check
          %p173 = pneg %p126
        $region14: #{tpu_custom_call.1} parent=11 // pred_check_branch
          %175 = sbr.rel (%p173) target = $region16
        $region15: #{tpu_custom_call.1} parent=11 // pred_region
          %p176 = scmp.lt.s32.totalorder %s31, 0
          %s177 = scalar_select %p176, %s31, 0
          %s178 = scalar_lea.vmem %s2, %s177
        $region16: #{tpu_custom_call.1} parent=11 // pred_fallthru
          _
      $region12: #{tpu_custom_call.1} parent=5 // pred_fallthru
        _
      %p179 = scmp.lt.s32.totalorder %s18, 4
      // Predicated region
      $region17: #{tpu_custom_call.1} parent=5 // pred_check
        %p180 = pneg %p179
      $region18: #{tpu_custom_call.1} parent=5 // pred_check_branch
        %182 = sbr.rel (%p180) target = $region20
      $region19: #{tpu_custom_call.1} parent=5 // pred_region
        // Predicated region
        $region21: #{tpu_custom_call.1} parent=19 // pred_check
          %p183 = pneg %p66
        $region22: #{tpu_custom_call.1} parent=19 // pred_check_branch
          %185 = sbr.rel (%p183) target = $region24
        $region23: #{tpu_custom_call.1} parent=19 // pred_region
          %s186 = sand.u32 %s56, 1
          %s187 = scalar_lea.sflag [#allocation3], %s186
          %s188 = sand.u32 %s56, 1
          %s189 = smul.addr %s188, 4
          %s190 = scalar_lea.vmem [#allocation2], %s189
          %s192 = ssub.s32 64, 64
          %193 = vsyncadd %s187, %s192
          %s194 = sadd.s32 %s28, %s25
          %s195 = smul.addr %s194, 64
          %s196 = scalar_lea.hbm %s0, %s195
          %s198 = sshll.u32 %s190, 4
          %s199 = int_to_ptr.vmem [resolvable:$true] %s198
          %201 = dma.hbm_to_vmem [thread:$0]  %s196, 64, %s199, %s187
        $region24: #{tpu_custom_call.1} parent=19 // pred_fallthru
          _
        // Predicated region
        $region25: #{tpu_custom_call.1} parent=19 // pred_check
          %p202 = pneg %p94
        $region26: #{tpu_custom_call.1} parent=19 // pred_check_branch
          %204 = sbr.rel (%p202) target = $region28
        $region27: #{tpu_custom_call.1} parent=19 // pred_region
          %s205 = sand.u32 %s84, 1
          %s206 = scalar_lea.sflag [#allocation6], %s205
          %s207 = sand.u32 %s84, 1
          %s208 = smul.addr %s207, 64
          %s209 = scalar_lea.vmem [#allocation5], %s208
          %s211 = ssub.s32 1024, 1024
          %212 = vsyncadd %s206, %s211
          %s213 = smul.addr %s26, 16
          %s214 = sadd.s32 %s27, %s213
          %s215 = smul.addr %s214, 64
          %s216 = scalar_lea.hbm %s1, %s215
          %s217 = sshll.u32 %s209, 4
          %s218 = int_to_ptr.vmem [resolvable:$true] %s217
          %223 = dma.hbm_to_vmem [thread:$0]  %s216, 1024, %s218, %s206, 64, 64, 4
        $region28: #{tpu_custom_call.1} parent=19 // pred_fallthru
          _
      $region20: #{tpu_custom_call.1} parent=5 // pred_fallthru
        _
      %p224 = scmp.le.s32.totalorder 1, %s18
      %p225 = scmp.lt.s32.totalorder %s18, 5
      %p226 = pnand %p224, %p225
      %p227 = pneg %p226
      // Predicated region
      $region29: #{tpu_custom_call.1} parent=5 // pred_check
        _
      $region30: #{tpu_custom_call.1} parent=5 // pred_check_branch
        %229 = sbr.rel (%p226) target = $region32
      $region31: #{tpu_custom_call.1} parent=5 // pred_region
        %s230 = ssub.s32 %s18, 1
        %s231 = sand.u32 %s59, 1
        %s232 = scalar_lea.sflag [#allocation3], %s231
        %s233 = sand.u32 %s59, 1
        %s234 = smul.addr %s233, 4
        %s235 = scalar_lea.vmem [#allocation2], %s234
        // Predicated region
        $region33: #{tpu_custom_call.1} parent=31 // pred_check
          %p236 = pneg %p72
        $region34: #{tpu_custom_call.1} parent=31 // pred_check_branch
          %238 = sbr.rel (%p236) target = $region36
        $region35: #{tpu_custom_call.1} parent=31 // pred_region
          %239 = dma.done %s232, 64
        $region36: #{tpu_custom_call.1} parent=31 // pred_fallthru
          _
        %s240 = sand.u32 %s87, 1
        %s241 = scalar_lea.sflag [#allocation6], %s240
        %s242 = sand.u32 %s87, 1
        %s243 = smul.addr %s242, 64
        %s244 = scalar_lea.vmem [#allocation5], %s243
        // Predicated region
        $region37: #{tpu_custom_call.1} parent=31 // pred_check
          %p245 = pneg %p100
        $region38: #{tpu_custom_call.1} parent=31 // pred_check_branch
          %247 = sbr.rel (%p245) target = $region40
        $region39: #{tpu_custom_call.1} parent=31 // pred_region
          %248 = dma.done %s241, 1024
        $region40: #{tpu_custom_call.1} parent=31 // pred_fallthru
          _
        %s249 = sand.u32 %s59, 1
        %s250 = scalar_lea.sflag [#allocation3], %s249
        %s251 = sand.u32 %s59, 1
        %s252 = smul.addr %s251, 4
        %s253 = scalar_lea.vmem [#allocation2], %s252
        %p254 = pneg %p72
        %p255 = pneg %p69
        %s256 = sand.u32 %s87, 1
        %s257 = scalar_lea.sflag [#allocation6], %s256
        %s258 = sand.u32 %s87, 1
        %s259 = smul.addr %s258, 64
        %s260 = scalar_lea.vmem [#allocation5], %s259
        %p261 = pneg %p100
        %p262 = pneg %p97
        %p263 = scmp.lt.s32.totalorder %s31, 0
        %s264 = scalar_select %p263, %s31, 0
        %s265 = scalar_lea.vmem %s2, %s264
        %p266 = pneg %p126
        %p267 = pneg %p123
        %p268 = pneg %p158
        %p269 = pneg %p155
        %s270 = sand.u32 %s145, 1
        %s271 = scalar_lea.sflag [#allocation4], %s270
        %s272 = sand.u32 %s145, 1
        %s273 = smul.addr %s272, 8
        %s274 = scalar_lea.vmem [#allocation7], %s273
        %p275 = scmp.lt.s32.totalorder %s31, 0
        %s276 = scalar_select %p275, %s31, 0
        %s277 = scalar_lea.vmem %s2, %s276
        %s278 = sadd.s32 %s30, %s31
        %v280 = vld [vmem:[%s235] sm:$0xf]
        %v281 = vld [vmem:[%s244] sm:$0xf]
        %v282 = vld [vmem:[%s244 + $0x4] sm:$0xf]
        %v283 = vld [vmem:[%s244 + $0x8] sm:$0xf]
        %v284 = vld [vmem:[%s244 + $0xc] sm:$0xf]
        %v285 = vld [vmem:[%s244 + $0x10] sm:$0xf]
        %v286 = vld [vmem:[%s244 + $0x14] sm:$0xf]
        %v287 = vld [vmem:[%s244 + $0x18] sm:$0xf]
        %v288 = vld [vmem:[%s244 + $0x1c] sm:$0xf]
        %v289 = vld [vmem:[%s244 + $0x20] sm:$0xf]
        %v290 = vld [vmem:[%s244 + $0x24] sm:$0xf]
        %v291 = vld [vmem:[%s244 + $0x28] sm:$0xf]
        %v292 = vld [vmem:[%s244 + $0x2c] sm:$0xf]
        %v293 = vld [vmem:[%s244 + $0x30] sm:$0xf]
        %v294 = vld [vmem:[%s244 + $0x34] sm:$0xf]
        %v295 = vld [vmem:[%s244 + $0x38] sm:$0xf]
        %v296 = vld [vmem:[%s244 + $0x3c] sm:$0xf]
        %v297 = vld [vmem:[%s277] sm:$0x1]
        %v299 = vlaneseq
        %v300 = vshrl.u32 %v299, 7
        %v301 = vsub.s32 0, %v300
        %v302 = vrot.slane %v297, %v301
        %v320 = vunpack.c.l.b16 %v281
        %v321 = vunpack.c.l.b16 %v282
        %v322 = vunpack.c.l.b16 %v283
        %v323 = vunpack.c.l.b16 %v284
        %v324 = vunpack.c.l.b16 %v285
        %v325 = vunpack.c.l.b16 %v286
        %v326 = vunpack.c.l.b16 %v287
        %v327 = vunpack.c.l.b16 %v288
        %v328 = vunpack.c.l.b16 %v289
        %v329 = vunpack.c.l.b16 %v290
        %v330 = vunpack.c.l.b16 %v291
        %v331 = vunpack.c.l.b16 %v292
        %v332 = vunpack.c.l.b16 %v293
        %v333 = vunpack.c.l.b16 %v294
        %v334 = vunpack.c.l.b16 %v295
        %v335 = vunpack.c.l.b16 %v296
        %v336 = vpack.c.b16 %v321, %v320
        %v337 = vpack.c.b16 %v323, %v322
        %v338 = vpack.c.b16 %v325, %v324
        %v339 = vpack.c.b16 %v327, %v326
        %v340 = vpack.c.b16 %v329, %v328
        %v341 = vpack.c.b16 %v331, %v330
        %v342 = vpack.c.b16 %v333, %v332
        %v343 = vpack.c.b16 %v335, %v334
        %352 = vmatprep.subr.bf16.mxu0 0
        %353 = vmatpush1.bf16.msra.mxu0 %v336
        %354 = vmatprep.subr.bf16.mxu0 0
        %355 = vmatpush1.bf16.msra.mxu0 %v337
        %356 = vmatprep.subr.bf16.mxu0 0
        %357 = vmatpush1.bf16.msra.mxu0 %v338
        %358 = vmatprep.subr.bf16.mxu0 0
        %359 = vmatpush1.bf16.msra.mxu0 %v339
        %360 = vmatprep.subr.bf16.mxu0 0
        %361 = vmatpush1.bf16.msra.mxu0 %v340
        %362 = vmatprep.subr.bf16.mxu0 0
        %363 = vmatpush1.bf16.msra.mxu0 %v341
        %364 = vmatprep.subr.bf16.mxu0 0
        %365 = vmatpush1.bf16.msra.mxu0 %v342
        %366 = vmatprep.subr.bf16.mxu0 0
        %367 = vmatpush1.bf16.msra.mxu0 %v343
        %368 = vmatprep.subr.bf16.mxu0 0
        %369 = vmatpush1.bf16.msra.mxu0 0
        %370 = vmatprep.subr.bf16.mxu0 0
        %371 = vmatpush1.bf16.msra.mxu0 0
        %372 = vmatprep.subr.bf16.mxu0 0
        %373 = vmatpush1.bf16.msra.mxu0 0
        %374 = vmatprep.subr.bf16.mxu0 0
        %375 = vmatpush1.bf16.msra.mxu0 0
        %376 = vmatprep.subr.bf16.mxu0 0
        %377 = vmatpush1.bf16.msra.mxu0 0
        %378 = vmatprep.subr.bf16.mxu0 0
        %379 = vmatpush1.bf16.msra.mxu0 0
        %380 = vmatprep.subr.bf16.mxu0 0
        %381 = vmatpush1.bf16.msra.mxu0 0
        %382 = vmatprep.subr.bf16.mxu0 0
        %383 = vmatpush1.bf16.msra.mxu0 0
        %384 = vmatprep.mubr.bf16.mxu0 0
        %385 = vmatmul.mubr.bf16.gmra.mrb[0].mxu0 %v280
        %v386 = vpop.f32.mrb[0].mxu0
        %v387 = vadd.f32 %v302, %v386
        %v388 = vpop.f32.mrb[0].mxu0
        %v389 = vpop.f32.mrb[0].mxu0
        %v390 = vpop.f32.mrb[0].mxu0
        %391 = vdwg.mxu0
        %392 = vst [vmem:[%s274] sm:$0xff] %v387
        %s393 = sand.u32 %s145, 1
        %s394 = scalar_lea.sflag [#allocation4], %s393
        %s395 = sand.u32 %s145, 1
        %s396 = smul.addr %s395, 8
        %s397 = scalar_lea.vmem [#allocation7], %s396
        // Predicated region
        $region41: #{tpu_custom_call.1} parent=31 // pred_check
          %p398 = pneg %p155
        $region42: #{tpu_custom_call.1} parent=31 // pred_check_branch
          %400 = sbr.rel (%p398) target = $region44
        $region43: #{tpu_custom_call.1} parent=31 // pred_region
          %s401 = sadd.s32 %s30, %s31
          %s403 = ssub.s32 128, 128
          %404 = vsyncadd %s394, %s403
          %s405 = smul.addr %s32, 2
          %s406 = sadd.s32 %s401, %s405
          %s407 = smul.addr %s29, 2
          %s408 = sadd.s32 %s406, %s407
          %s409 = smul.addr %s408, 128
          %s410 = scalar_lea.hbm %s3, %s409
          %s412 = sshll.u32 %s397, 4
          %s413 = int_to_ptr.vmem [resolvable:$true] %s412
          %415 = dma.vmem_to_hbm [thread:$0]  %s413, 128, %s410, %s394
        $region44: #{tpu_custom_call.1} parent=31 // pred_fallthru
          _
      $region32: #{tpu_custom_call.1} parent=5 // pred_fallthru
        _
      %p416 = scmp.le.s32.totalorder 2, %s18
      // Predicated region
      $region45: #{tpu_custom_call.1} parent=5 // pred_check
        %p417 = pneg %p416
      $region46: #{tpu_custom_call.1} parent=5 // pred_check_branch
        %419 = sbr.rel (%p417) target = $region48
      $region47: #{tpu_custom_call.1} parent=5 // pred_region
        %s420 = ssub.s32 %s18, 2
        // Predicated region
        $region49: #{tpu_custom_call.1} parent=47 // pred_check
          %p421 = pneg %p161
        $region50: #{tpu_custom_call.1} parent=47 // pred_check_branch
          %423 = sbr.rel (%p421) target = $region52
        $region51: #{tpu_custom_call.1} parent=47 // pred_region
          %s424 = sand.u32 %s146, 1
          %s425 = scalar_lea.sflag [#allocation4], %s424
          %s426 = sand.u32 %s146, 1
          %s427 = smul.addr %s426, 8
          %s428 = scalar_lea.vmem [#allocation7], %s427
          %429 = dma.done %s425, 128
        $region52: #{tpu_custom_call.1} parent=47 // pred_fallthru
          _
      $region48: #{tpu_custom_call.1} parent=5 // pred_fallthru
        _
    $region6: #{tpu_custom_call.1} parent=1 // loop_footer
      %s22 = sadd.s32 1, %s18
    $region7: #{tpu_custom_call.1} parent=1 // loop_footer_branch
      %17 = sbr.rel target = $region3
    $region8: #{tpu_custom_call.1} parent=1 // loop_exit
      _
    %430 = vsyncpa [#allocation3], 1
    %s431 = scalar_lea.sflag [#allocation3], 1
    %432 = vsyncpa %s431, 1
    %433 = vsyncpa [#allocation6], 1
    %s434 = scalar_lea.sflag [#allocation6], 1
    %435 = vsyncpa %s434, 1
    %436 = vsyncpa [#allocation4], 1
    %s437 = scalar_lea.sflag [#allocation4], 1
    %438 = vsyncpa %s437, 1

</llo_original>
